<compile_context>
chip_gen: v6e
topology: v6e:2x2x1
jax: 0.10.0
libtpu: 0.0.40
codegen_flags: <defaults>
</compile_context>

<pallas_src>
import functools

import numpy as np
import jax
import jax.numpy as jnp
from jax import lax
from jax.experimental import pallas as pl
from jax.experimental.pallas import tpu as pltpu


# --------------------------------------------------------------------------- #
# Constant interpolation / tap matrices (host-side, shape-only, tiny, cached)
# --------------------------------------------------------------------------- #
@functools.lru_cache(maxsize=None)
def _bilinear_matrix(in_size, out_size):
    """U (out,in) s.t. U @ v == F.interpolate(v, mode='bilinear', align_corners=False)."""
    U = np.zeros((out_size, in_size), dtype=np.float32)
    scale = in_size / out_size
    for i in range(out_size):
        src = (i + 0.5) * scale - 0.5
        src = min(max(src, 0.0), float(in_size - 1))
        i0 = int(np.floor(src))
        i1 = min(i0 + 1, in_size - 1)
        lam = src - i0
        U[i, i0] += 1.0 - lam
        U[i, i1] += lam
    return U


def _reflect(t, size):
    if t < 0:
        return -t
    if t >= size:
        return 2 * size - 2 - t
    return t


@functools.lru_cache(maxsize=None)
def _tap_matrices(in_size, up_size, K, pad):
    """taps[k] (out, in): row r picks the bilinear row of the reflect-padded upsampled
    signal at padded position r + k (i.e. unpadded upsampled position r + k - pad)."""
    U = _bilinear_matrix(in_size, up_size)
    out_rows = up_size + 2 * pad - (K - 1)
    taps = np.zeros((K, out_rows, in_size), dtype=np.float32)
    for k in range(K):
        for r in range(out_rows):
            taps[k, r] = U[_reflect(r + k - pad, up_size)]
    return taps


# --------------------------------------------------------------------------- #
# VMEM budgeting / tiling
# --------------------------------------------------------------------------- #
def _vmem_limit_bytes():
    try:
        cap = int(pltpu.get_tpu_info().vmem_capacity_bytes)
    except Exception:
        cap = 64 * 1024 * 1024          # assume the smallest (v7x per-core VMEM)
    # ~96 MiB on v5e/v6e (128 MiB physical), ~48 MiB on v7x (64 MiB physical).
    return int(min(cap * 3 // 4, 100 * 1024 * 1024))


def _pick_row_tile(Ho, n_batch, est_fn, budget):
    """Largest divisor of Ho that is sublane-aligned (t % 8 == 0, or t == Ho as fallback),
    fits the VMEM budget, and keeps >= 2 grid steps so v7x's second TensorCore has work."""
    cands = sorted({t for t in range(1, Ho + 1)
                    if Ho % t == 0 and (t % 8 == 0 or t == Ho)}, reverse=True)
    fallback = cands[-1]
    for t in cands:
        if est_fn(t) > budget:
            continue
        if n_batch * (Ho // t) < 2 and t != fallback:
            continue
        return t
    return fallback


# --------------------------------------------------------------------------- #
# Pallas kernel: fused upsample + reflect-pad + depthwise KxK + pointwise 1x1
# --------------------------------------------------------------------------- #
def _deconv_kernel(x2_ref, ah_ref, m_ref, bias_ref, out_ref, *, K, tHo, compute_dtype):
    # x2_ref  : (1, H, C*W)     input image, channels packed into lanes
    # ah_ref  : (1, K*tHo, H)   stacked row-interp taps for this output-row tile
    # m_ref   : (K, C*W, O*Wo)  col-interp taps with depthwise AND pointwise weights folded in
    # bias_ref: (1, O*Wo)       folded bias (wp @ bd + bp), f32
    # out_ref : (1, tHo, O*Wo)  lane-dense output slab (single wide unmasked store)
    x2 = x2_ref[0]                                                   # (H, C*W)
    ah = ah_ref[0]                                                   # (K*tHo, H)

    # Row interpolation (fused bilinear upsample + reflect pad along H): all K vertical
    # taps stacked into one non-batched MXU matmul with C*W output lanes.
    r = jnp.dot(ah, x2, preferred_element_type=jnp.float32)          # (K*tHo, C*W) f32
    r = r.astype(compute_dtype)

    # Column interpolation + depthwise + pointwise 1x1, folded into M.  K is small and
    # static -> unrolled; slices are sublane-aligned when tHo % 8 == 0.
    acc = None
    for kh in range(K):
        rk = r[kh * tHo:(kh + 1) * tHo, :]                           # (tHo, C*W)
        part = jnp.dot(rk, m_ref[kh],
                       preferred_element_type=jnp.float32)           # (tHo, O*Wo)
        acc = part if acc is None else acc + part

    # Folded bias; norm = Identity, act = Identity (module defaults norm_layer='', activation='').
    out_ref[0] = (acc + bias_ref[...]).astype(out_ref.dtype)


def _my_deconv2d_impl(x, wd, bd, wp, bp, *, stride=2, padding=1,
                      compute_dtype=jnp.bfloat16):
    """x: (N,C,H,W); wd: (C,K,K) depthwise weight; bd: (C,); wp: (O,C) pointwise; bp: (O,)."""
    N, C, H, W = x.shape
    O = wp.shape[0]
    K = wd.shape[-1]
    Hu, Wu = H * stride, W * stride
    Ho = Hu + 2 * padding - (K - 1)                  # conv output size on upsampled image
    Wo = Wu + 2 * padding - (K - 1)
    assert padding < Hu and padding < Wu, "reflect padding requires padding < upsampled size"

    CW, OWo = C * W, O * Wo
    in_bytes = jnp.dtype(compute_dtype).itemsize
    out_bytes = jnp.dtype(x.dtype).itemsize

    def est(t):                                      # per-step VMEM estimate (bytes)
        blocks = (H * CW * in_bytes                  # x2 block
                  + K * t * H * in_bytes             # Ah block
                  + K * CW * OWo * in_bytes          # folded tap table
                  + OWo * 4                          # bias row
                  + t * OWo * out_bytes)             # output block
        live = K * t * CW * (4 + in_bytes) + 2 * t * OWo * 4   # in-kernel values
        return 2 * blocks + live                     # 2x: double-buffered pipeline stages

    vmem_limit = _vmem_limit_bytes()
    tHo = _pick_row_tile(Ho, N, est, budget=(vmem_limit * 3) // 4)
    nJ = Ho // tHo
    grid = (N, nJ)

    # ---- constant tables (host numpy, lru-cached on shape) ------------------------- #
    taps_h = _tap_matrices(H, Hu, K, padding)                        # (K, Ho, H)
    taps_w = _tap_matrices(W, Wu, K, padding)                        # (K, Wo, W)
    # Row taps pre-tiled so each grid step reads one (K*tHo, H) slab.
    ah_np = taps_h.reshape(K, nJ, tHo, H).transpose(1, 0, 2, 3).reshape(nJ, K * tHo, H)
    ah = jnp.asarray(ah_np, dtype=compute_dtype)

    # Fold depthwise AND pointwise weights into the column-tap table:
    #   M[kh, c*W+w, o*Wo+v] = sum_kw wp[o,c] * wd[c,kh,kw] * taps_w[kw, v, w]
    aw = jnp.asarray(taps_w)
    bk = jnp.einsum("chk,kvw->hcwv", wd.astype(jnp.float32), aw)     # (K, C, W, Wo)
    m = jnp.einsum("oc,hcwv->hcwov", wp.astype(jnp.float32), bk)     # (K, C, W, O, Wo)
    m = m.reshape(K, CW, OWo).astype(compute_dtype)
    # TODO(synk): for very large C*W / O*Wo, tile M over channels instead of holding it whole,
    # and single-buffer it (pipeline_mode=pl.Buffered(1)) to halve its footprint on v7x.

    bias_fold = (wp.astype(jnp.float32) @ bd.astype(jnp.float32)
                 + bp.astype(jnp.float32))                           # (O,)  = wp@bd + bp
    bias_row = jnp.repeat(bias_fold, Wo).reshape(1, OWo)             # (1, O*Wo), f32

    # Pre-transpose once (cheap XLA op) so the kernel's row matmul is a single wide
    # non-batched contraction with C*W output lanes.
    x2 = jnp.transpose(x, (0, 2, 1, 3)).reshape(N, H, CW).astype(compute_dtype)

    kernel = functools.partial(_deconv_kernel, K=K, tHo=tHo, compute_dtype=compute_dtype)

    flops = 2 * N * nJ * (K * tHo * H * CW + K * tHo * CW * OWo)
    bytes_accessed = (x2.size * in_bytes + ah.size * in_bytes + m.size * in_bytes
                      + bias_row.size * 4 + N * Ho * OWo * out_bytes)

    out_flat = pl.pallas_call(
        kernel,
        out_shape=jax.ShapeDtypeStruct((N, Ho, OWo), x.dtype),
        grid_spec=pltpu.PrefetchScalarGridSpec(
            num_scalar_prefetch=0,
            grid=grid,
            in_specs=[
                pl.BlockSpec((1, H, CW), lambda n, j: (n, 0, 0)),        # image (per batch)
                pl.BlockSpec((1, K * tHo, H), lambda n, j: (j, 0, 0)),   # row taps (per tile)
                # Constant-index blocks: Pallas skips the re-DMA when the block index does
                # not change between grid steps, so these are fetched once per kernel call.
                pl.BlockSpec((K, CW, OWo), lambda n, j: (0, 0, 0)),      # folded tap table
                pl.BlockSpec((1, OWo), lambda n, j: (0, 0)),             # folded bias
            ],
            out_specs=pl.BlockSpec((1, tHo, OWo), lambda n, j: (n, j, 0)),
        ),
        compiler_params=pltpu.CompilerParams(
            dimension_semantics=("parallel", "parallel"),
            vmem_limit_bytes=vmem_limit,
        ),
        cost_estimate=pl.CostEstimate(flops=int(flops), transcendentals=0,
                                      bytes_accessed=int(bytes_accessed)),
    )(x2, ah, m, bias_row)

    # (N, Ho, O, Wo) -> NCHW; one cheap XLA transpose of the (small) output tensor.
    return out_flat.reshape(N, Ho, O, Wo).transpose(0, 2, 1, 3)


my_deconv2d = jax.jit(_my_deconv2d_impl,
                      static_argnames=("stride", "padding", "compute_dtype"))


# --------------------------------------------------------------------------- #
# Pure-JAX f32 reference (bilinear upsample + reflect pad + separable conv)
# --------------------------------------------------------------------------- #
def bilinear_upsample(x, scale):
    N, C, H, W = x.shape

    def coords(out_size, in_size):
        i = jnp.arange(out_size, dtype=jnp.float32)
        src = (i + 0.5) * (in_size / out_size) - 0.5
        src = jnp.clip(src, 0.0, in_size - 1)
        i0 = jnp.floor(src).astype(jnp.int32)
        i1 = jnp.minimum(i0 + 1, in_size - 1)
        lam = src - i0.astype(jnp.float32)
        return i0, i1, lam

    h0, h1, lh = coords(H * scale, H)
    w0, w1, lw = coords(W * scale, W)
    top, bot = x[:, :, h0, :], x[:, :, h1, :]
    rows = top * (1.0 - lh)[None, None, :, None] + bot * lh[None, None, :, None]
    left, right = rows[:, :, :, w0], rows[:, :, :, w1]
    return left * (1.0 - lw)[None, None, None, :] + right * lw[None, None, None, :]


def reference_forward(x, wd, bd, wp, bp, *, stride=2, padding=1):
    N, C, H, W = x.shape
    O = wp.shape[0]
    K = wd.shape[-1]
    x_up = bilinear_upsample(x, stride)
    xpad = jnp.pad(x_up, ((0, 0), (0, 0), (padding, padding), (padding, padding)),
                   mode="reflect")
    dw = lax.conv_general_dilated(
        xpad, wd.reshape(C, 1, K, K), (1, 1), "VALID",
        feature_group_count=C, dimension_numbers=("NCHW", "OIHW", "NCHW"))
    dw = dw + bd.reshape(1, C, 1, 1)
    pw = lax.conv_general_dilated(
        dw, wp.reshape(O, C, 1, 1), (1, 1), "VALID",
        dimension_numbers=("NCHW", "OIHW", "NCHW"))
    return pw + bp.reshape(1, O, 1, 1)


if __name__ == "__main__":
    # MyDeConv2d(in_channels=4, out_channels=8, kernel_size=3, stride=2, padding=1,
    #            kind='depthConv', scale_mode='bilinear', norm_layer='', activation='')
    N, C, O, H, W, K = 2, 4, 8, 16, 16, 3
    stride, padding = 2, 1

    key = jax.random.PRNGKey(0)
    kx, k1, k2, k3, k4 = jax.random.split(key, 5)

    x = jax.random.normal(kx, (N, C, H, W), dtype=jnp.float32)
    # depthwise conv (PyTorch weight (C,1,K,K)), kaiming_normal_: std = sqrt(2/fan_in)
    wd = jax.random.normal(k1, (C, K, K), dtype=jnp.float32) * np.sqrt(2.0 / (K * K))
    bd = jax.random.uniform(k2, (C,), jnp.float32,
                            minval=-1.0 / np.sqrt(K * K), maxval=1.0 / np.sqrt(K * K))
    # pointwise conv (PyTorch weight (O,C,1,1)), kaiming_normal_: std = sqrt(2/C)
    wp = jax.random.normal(k3, (O, C), dtype=jnp.float32) * np.sqrt(2.0 / C)
    bp = jax.random.uniform(k4, (O,), jnp.float32,
                            minval=-1.0 / np.sqrt(C), maxval=1.0 / np.sqrt(C))

    out = jax.block_until_ready(
        my_deconv2d(x, wd, bd, wp, bp, stride=stride, padding=padding))
    ref = jax.block_until_ready(
        reference_forward(x, wd, bd, wp, bp, stride=stride, padding=padding))

    assert out.shape == ref.shape == (N, O, H * stride, W * stride), (out.shape, ref.shape)
    # bf16 MXU inputs with f32 accumulation -> loosened tolerance (review guidance).
    np.testing.assert_allclose(np.asarray(out), np.asarray(ref), rtol=5e-2, atol=5e-2)
    print("KERNEL_OK")
</pallas_src>

<mosaic_0001>
module attributes {stable_mosaic.version = 11 : i64} {
  func.func @_deconv_kernel(%arg0: i32, %arg1: i32, %arg2: memref<1x16x64xbf16, #tpu.memory_space<vmem>>, %arg3: memref<1x96x16xbf16, #tpu.memory_space<vmem>>, %arg4: memref<3x64x256xbf16, #tpu.memory_space<vmem>>, %arg5: memref<1x256xf32, #tpu.memory_space<vmem>>, %arg6: memref<1x32x256xf32, #tpu.memory_space<vmem>>) attributes {dimension_semantics = [#tpu.dimension_semantics<parallel>, #tpu.dimension_semantics<parallel>], iteration_bounds = array<i64: 2, 1>, scalar_prefetch = 0 : i64, scratch_operands = 0 : i64, tpu.core_type = #tpu.core_type<tc>, window_params = [{transform_indices = @transform_0, window_bounds = array<i64: 1, 16, 64>}, {transform_indices = @transform_1, window_bounds = array<i64: 1, 96, 16>}, {pipeline_mode = #tpu.pipeline_mode<synchronous>, transform_indices = @transform_2, window_bounds = array<i64: 3, 64, 256>}, {pipeline_mode = #tpu.pipeline_mode<synchronous>, transform_indices = @transform_3, window_bounds = array<i64: 1, 256>}, {transform_indices = @transform_4, window_bounds = array<i64: 1, 32, 256>}]} {
    %c0 = arith.constant 0 : index
    %c0_0 = arith.constant 0 : index
    %c0_1 = arith.constant 0 : index
    %0 = vector.load %arg2[%c0, %c0_0, %c0_1] : memref<1x16x64xbf16, #tpu.memory_space<vmem>>, vector<1x16x64xbf16>
    %1 = vector.shape_cast %0 : vector<1x16x64xbf16> to vector<16x64xbf16>
    %c0_2 = arith.constant 0 : index
    %c0_3 = arith.constant 0 : index
    %c0_4 = arith.constant 0 : index
    %2 = vector.load %arg3[%c0_2, %c0_3, %c0_4] : memref<1x96x16xbf16, #tpu.memory_space<vmem>>, vector<1x96x16xbf16>
    %3 = vector.shape_cast %2 : vector<1x96x16xbf16> to vector<96x16xbf16>
    %cst = arith.constant dense<0.000000e+00> : vector<96x64xf32>
    %4 = tpu.matmul %3, %1, %cst {dimension_numbers = #tpu.dot_dimension_numbers<[1], [0], [0], [1], [0, 0, 1, 1], [], []>} : vector<96x16xbf16>, vector<16x64xbf16>, vector<96x64xf32> -> vector<96x64xf32>
    %5 = arith.truncf %4 : vector<96x64xf32> to vector<96x64xbf16>
    %6 = vector.extract_strided_slice %5 {offsets = [0, 0], sizes = [32, 64], strides = [1, 1]} : vector<96x64xbf16> to vector<32x64xbf16>
    %c0_5 = arith.constant 0 : index
    %c0_6 = arith.constant 0 : index
    %c0_7 = arith.constant 0 : index
    %7 = vector.load %arg4[%c0_5, %c0_6, %c0_7] : memref<3x64x256xbf16, #tpu.memory_space<vmem>>, vector<1x64x256xbf16>
    %8 = vector.shape_cast %7 : vector<1x64x256xbf16> to vector<64x256xbf16>
    %cst_8 = arith.constant dense<0.000000e+00> : vector<32x256xf32>
    %9 = tpu.matmul %6, %8, %cst_8 {dimension_numbers = #tpu.dot_dimension_numbers<[1], [0], [0], [1], [0, 0, 1, 1], [], []>} : vector<32x64xbf16>, vector<64x256xbf16>, vector<32x256xf32> -> vector<32x256xf32>
    %10 = vector.extract_strided_slice %5 {offsets = [32, 0], sizes = [32, 64], strides = [1, 1]} : vector<96x64xbf16> to vector<32x64xbf16>
    %c1 = arith.constant 1 : index
    %c0_9 = arith.constant 0 : index
    %c0_10 = arith.constant 0 : index
    %11 = vector.load %arg4[%c1, %c0_9, %c0_10] : memref<3x64x256xbf16, #tpu.memory_space<vmem>>, vector<1x64x256xbf16>
    %12 = vector.shape_cast %11 : vector<1x64x256xbf16> to vector<64x256xbf16>
    %cst_11 = arith.constant dense<0.000000e+00> : vector<32x256xf32>
    %13 = tpu.matmul %10, %12, %cst_11 {dimension_numbers = #tpu.dot_dimension_numbers<[1], [0], [0], [1], [0, 0, 1, 1], [], []>} : vector<32x64xbf16>, vector<64x256xbf16>, vector<32x256xf32> -> vector<32x256xf32>
    %14 = arith.addf %9, %13 : vector<32x256xf32>
    %15 = vector.extract_strided_slice %5 {offsets = [64, 0], sizes = [32, 64], strides = [1, 1]} : vector<96x64xbf16> to vector<32x64xbf16>
    %c2 = arith.constant 2 : index
    %c0_12 = arith.constant 0 : index
    %c0_13 = arith.constant 0 : index
    %16 = vector.load %arg4[%c2, %c0_12, %c0_13] : memref<3x64x256xbf16, #tpu.memory_space<vmem>>, vector<1x64x256xbf16>
    %17 = vector.shape_cast %16 : vector<1x64x256xbf16> to vector<64x256xbf16>
    %cst_14 = arith.constant dense<0.000000e+00> : vector<32x256xf32>
    %18 = tpu.matmul %15, %17, %cst_14 {dimension_numbers = #tpu.dot_dimension_numbers<[1], [0], [0], [1], [0, 0, 1, 1], [], []>} : vector<32x64xbf16>, vector<64x256xbf16>, vector<32x256xf32> -> vector<32x256xf32>
    %19 = arith.addf %14, %18 : vector<32x256xf32>
    %c0_15 = arith.constant 0 : index
    %c0_16 = arith.constant 0 : index
    %20 = vector.load %arg5[%c0_15, %c0_16] : memref<1x256xf32, #tpu.memory_space<vmem>>, vector<1x256xf32>
    %21 = vector.broadcast %20 : vector<1x256xf32> to vector<32x256xf32>
    %22 = arith.addf %19, %21 : vector<32x256xf32>
    %c0_17 = arith.constant 0 : index
    %c0_18 = arith.constant 0 : index
    %c0_19 = arith.constant 0 : index
    %23 = vector.load %arg6[%c0_17, %c0_18, %c0_19] : memref<1x32x256xf32, #tpu.memory_space<vmem>>, vector<1x32x256xf32>
    %24 = vector.shape_cast %23 : vector<1x32x256xf32> to vector<32x256xf32>
    %25 = vector.shape_cast %22 : vector<32x256xf32> to vector<1x32x256xf32>
    tpu.vector_store %arg6[%c0_17, %c0_18, %c0_19], %25 {strides = array<i32>} : memref<1x32x256xf32, #tpu.memory_space<vmem>>, vector<1x32x256xf32>,
    return
  }
  func.func @transform_0(%arg0: i32, %arg1: i32) -> (i32, i32, i32) {
    %c0_i32 = arith.constant 0 : i32
    %c0_i32_0 = arith.constant 0 : i32
    %c0_i32_1 = arith.constant 0 : i32
    return %arg0, %c0_i32, %c0_i32_0 : i32, i32, i32
  }
  func.func @transform_1(%arg0: i32, %arg1: i32) -> (i32, i32, i32) {
    %c0_i32 = arith.constant 0 : i32
    %c0_i32_0 = arith.constant 0 : i32
    %c0_i32_1 = arith.constant 0 : i32
    return %arg1, %c0_i32, %c0_i32_0 : i32, i32, i32
  }
  func.func @transform_2(%arg0: i32, %arg1: i32) -> (i32, i32, i32) {
    %c0_i32 = arith.constant 0 : i32
    %c0_i32_0 = arith.constant 0 : i32
    %c0_i32_1 = arith.constant 0 : i32
    %c0_i32_2 = arith.constant 0 : i32
    return %c0_i32, %c0_i32_0, %c0_i32_1 : i32, i32, i32
  }
  func.func @transform_3(%arg0: i32, %arg1: i32) -> (i32, i32) {
    %c0_i32 = arith.constant 0 : i32
    %c0_i32_0 = arith.constant 0 : i32
    %c0_i32_1 = arith.constant 0 : i32
    return %c0_i32, %c0_i32_0 : i32, i32
  }
  func.func @transform_4(%arg0: i32, %arg1: i32) -> (i32, i32, i32) {
    %c0_i32 = arith.constant 0 : i32
    %c0_i32_0 = arith.constant 0 : i32
    return %arg0, %arg1, %c0_i32 : i32, i32, i32
  }
}

</mosaic_0001>

<llo_original>
// kernel: _my_deconv2d_impl.1
$region0: #{_my_deconv2d_impl.1}
  #allocation0 [shape = 'u32[]', space=smem, size = 0x4, offset = 0x4, fixed_abs, tag = 'smem constant byte address 0x4 - core index']
  #allocation1 [shape = 'u32[144,128]{1,0:T(1,128)}', space=vmem, size = 0x12000, scoped, tag = 'internal scratch']
  %s0 = inlined_call_operand.vmem [shape: bf16[2,16,64], index: 0, kind: input, shape index: {}]
  %s1 = inlined_call_operand.vmem [shape: bf16[1,96,16], index: 1, kind: input, shape index: {}]
  %s2 = inlined_call_operand.vmem [shape: bf16[3,64,256], index: 2, kind: input, shape index: {}]
  %s3 = inlined_call_operand.vmem [shape: f32[1,256], index: 3, kind: input, shape index: {}]
  %s4 = inlined_call_operand.vmem [shape: f32[2,32,256], index: 4, kind: output, shape index: {}]
  %s5 = sld [smem:[#allocation0]]
  $region49: #{_my_deconv2d_impl.1} parent=0
    _
  %s7 = ssub.s32 1, %s5
  %s8 = scalar_select 0, %s7, %s5
  loop: start=0, step=1, limit=4
  $region2: #{_my_deconv2d_impl.1} parent=0 // loop_pre_header
    _
  $region3: #{_my_deconv2d_impl.1} parent=0 // loop_header
    %s10 = sphi 0, %s14
    %p11 = scmp.ge.s32.totalorder %s10, 4
    %s17 = sphi 0, %s29
    %s18 = sphi 0, %s25
    %s19 = sphi 0, %s17
    %s20 = sphi 0, %s18
    %s21 = sphi 0, %s19
    %s22 = sphi 0, %s20
    %s32 = sphi 0, %s34
    %s35 = sphi 0, %s32
    %s36 = sphi 0, %s35
    %s52 = sphi 0, %s36
    %s58 = sphi 0, %s60
    %s61 = sphi 0, %s58
    %s62 = sphi 0, %s61
    %s78 = sphi 0, %s62
    %s82 = sphi 0, %s82
    %s84 = sphi 0, %s82
    %s85 = sphi 0, %s84
    %s99 = sphi 0, %s85
    %s103 = sphi 0, %s103
    %s105 = sphi 0, %s103
    %s106 = sphi 0, %s105
    %s120 = sphi 0, %s106
    %s128 = sphi 0, %s130
    %s131 = sphi 0, %s128
    %s132 = sphi 0, %s131
    %s148 = sphi 0, %s132
  $region4: #{_my_deconv2d_impl.1} parent=0 // loop_header_branch
    %13 = sbr.rel (%p11) target = $region8
  $region5: #{_my_deconv2d_impl.1} parent=0 // loop_body
    %s15 = ssub.s32 %s10, 1
    %s16 = ssub.s32 %s10, 2
    %s23 = sadd.s32 1, %s18
    %p24 = scmp.ge.s32.totalorder %s23, 1
    %s25 = scalar_select %p24, 0, %s23
    %s26 = sadd.s32 1, %s17
    %s27 = scalar_select %p24, %s26, %s17
    %p28 = scmp.ge.s32.totalorder %s27, 2
    %s29 = scalar_select %p28, 0, %s27
    %s30 = ssub.s32 %s17, %s29
    %p31 = scmp.eq.s32.totalorder %s30, 0
    %s33 = sadd.s32 %s32, 1
    %s34 = scalar_select %p31, %s32, %s33
    %p37 = pneg %p31
    %p38 = scmp.eq.s32.totalorder %s10, 1
    %p39 = por %p37, %p38
    %p40 = scmp.ne.s32.totalorder %s32, %s35
    %p41 = scmp.eq.s32.totalorder %s10, 0
    %p42 = por %p40, %p41
    %p43 = scmp.ne.s32.totalorder %s32, %s35
    %p44 = scmp.eq.s32.totalorder %s15, 1
    %p45 = por %p43, %p44
    %p46 = scmp.ne.s32.totalorder %s35, %s36
    %p47 = scmp.eq.s32.totalorder %s15, 0
    %p48 = por %p46, %p47
    %p49 = scmp.ne.s32.totalorder %s35, %s36
    %p50 = scmp.eq.s32.totalorder %s16, 1
    %p51 = por %p49, %p50
    %p53 = scmp.ne.s32.totalorder %s36, %s52
    %p54 = scmp.eq.s32.totalorder %s16, 0
    %p55 = por %p53, %p54
    %s56 = ssub.s32 %s18, %s25
    %p57 = scmp.eq.s32.totalorder %s56, 0
    %s59 = sadd.s32 %s58, 1
    %s60 = scalar_select %p57, %s58, %s59
    %p63 = pneg %p57
    %p64 = scmp.eq.s32.totalorder %s10, 1
    %p65 = por %p63, %p64
    %p66 = scmp.ne.s32.totalorder %s58, %s61
    %p67 = scmp.eq.s32.totalorder %s10, 0
    %p68 = por %p66, %p67
    %p69 = scmp.ne.s32.totalorder %s58, %s61
    %p70 = scmp.eq.s32.totalorder %s15, 1
    %p71 = por %p69, %p70
    %p72 = scmp.ne.s32.totalorder %s61, %s62
    %p73 = scmp.eq.s32.totalorder %s15, 0
    %p74 = por %p72, %p73
    %p75 = scmp.ne.s32.totalorder %s61, %s62
    %p76 = scmp.eq.s32.totalorder %s16, 1
    %p77 = por %p75, %p76
    %p79 = scmp.ne.s32.totalorder %s62, %s78
    %p80 = scmp.eq.s32.totalorder %s16, 0
    %p81 = por %p79, %p80
    %s83 = sadd.s32 %s82, 1
    %p86 = scmp.eq.s32.totalorder %s10, 1
    %p87 = scmp.ne.s32.totalorder %s82, %s84
    %p88 = scmp.eq.s32.totalorder %s10, 0
    %p89 = por %p87, %p88
    %p90 = scmp.ne.s32.totalorder %s82, %s84
    %p91 = scmp.eq.s32.totalorder %s15, 1
    %p92 = por %p90, %p91
    %p93 = scmp.ne.s32.totalorder %s84, %s85
    %p94 = scmp.eq.s32.totalorder %s15, 0
    %p95 = por %p93, %p94
    %p96 = scmp.ne.s32.totalorder %s84, %s85
    %p97 = scmp.eq.s32.totalorder %s16, 1
    %p98 = por %p96, %p97
    %p100 = scmp.ne.s32.totalorder %s85, %s99
    %p101 = scmp.eq.s32.totalorder %s16, 0
    %p102 = por %p100, %p101
    %s104 = sadd.s32 %s103, 1
    %p107 = scmp.eq.s32.totalorder %s10, 1
    %p108 = scmp.ne.s32.totalorder %s103, %s105
    %p109 = scmp.eq.s32.totalorder %s10, 0
    %p110 = por %p108, %p109
    %p111 = scmp.ne.s32.totalorder %s103, %s105
    %p112 = scmp.eq.s32.totalorder %s15, 1
    %p113 = por %p111, %p112
    %p114 = scmp.ne.s32.totalorder %s105, %s106
    %p115 = scmp.eq.s32.totalorder %s15, 0
    %p116 = por %p114, %p115
    %p117 = scmp.ne.s32.totalorder %s105, %s106
    %p118 = scmp.eq.s32.totalorder %s16, 1
    %p119 = por %p117, %p118
    %p121 = scmp.ne.s32.totalorder %s106, %s120
    %p122 = scmp.eq.s32.totalorder %s16, 0
    %p123 = por %p121, %p122
    %s124 = ssub.s32 %s17, %s29
    %s125 = ssub.s32 %s18, %s25
    %s126 = sor.u32 %s124, %s125
    %p127 = scmp.eq.s32.totalorder %s126, 0
    %s129 = sadd.s32 %s128, 1
    %s130 = scalar_select %p127, %s128, %s129
    %p133 = pneg %p127
    %p134 = scmp.eq.s32.totalorder %s10, 1
    %p135 = por %p133, %p134
    %p136 = scmp.ne.s32.totalorder %s128, %s131
    %p137 = scmp.eq.s32.totalorder %s10, 0
    %p138 = por %p136, %p137
    %p139 = scmp.ne.s32.totalorder %s128, %s131
    %p140 = scmp.eq.s32.totalorder %s15, 1
    %p141 = por %p139, %p140
    %p142 = scmp.ne.s32.totalorder %s131, %s132
    %p143 = scmp.eq.s32.totalorder %s15, 0
    %p144 = por %p142, %p143
    %p145 = scmp.ne.s32.totalorder %s131, %s132
    %p146 = scmp.eq.s32.totalorder %s16, 1
    %p147 = por %p145, %p146
    %p149 = scmp.ne.s32.totalorder %s132, %s148
    %p150 = scmp.eq.s32.totalorder %s16, 0
    %p151 = por %p149, %p150
    %p152 = scmp.le.s32.totalorder 1, %s10
    %p153 = scmp.lt.s32.totalorder %s10, 3
    %p154 = pnand %p152, %p153
    %p155 = pneg %p154
    // Predicated region
    $region9: #{_my_deconv2d_impl.1} parent=5 // pred_check
      _
    $region10: #{_my_deconv2d_impl.1} parent=5 // pred_check_branch
      %157 = sbr.rel (%p154) target = $region12
    $region11: #{_my_deconv2d_impl.1} parent=5 // pred_region
      %s158 = ssub.s32 %s10, 1
      // Predicated region
      $region13: #{_my_deconv2d_impl.1} parent=11 // pred_check
        %p159 = pneg %p74
      $region14: #{_my_deconv2d_impl.1} parent=11 // pred_check_branch
        %161 = sbr.rel (%p159) target = $region16
      $region15: #{_my_deconv2d_impl.1} parent=11 // pred_region
        %p162 = scmp.lt.s32.totalorder %s20, 0
        %s163 = scalar_select %p162, %s20, 0
        %s164 = smul.addr %s163, 12
        %s165 = smul.addr %s164, 4
        %s166 = scalar_lea.vmem %s1, %s165
      $region16: #{_my_deconv2d_impl.1} parent=11 // pred_fallthru
        _
      // Predicated region
      $region17: #{_my_deconv2d_impl.1} parent=11 // pred_check
        %p167 = pneg %p95
      $region18: #{_my_deconv2d_impl.1} parent=11 // pred_check_branch
        %169 = sbr.rel (%p167) target = $region20
      $region19: #{_my_deconv2d_impl.1} parent=11 // pred_region
        _
      $region20: #{_my_deconv2d_impl.1} parent=11 // pred_fallthru
        _
      // Predicated region
      $region21: #{_my_deconv2d_impl.1} parent=11 // pred_check
        %p170 = pneg %p116
      $region22: #{_my_deconv2d_impl.1} parent=11 // pred_check_branch
        %172 = sbr.rel (%p170) target = $region24
      $region23: #{_my_deconv2d_impl.1} parent=11 // pred_region
        _
      $region24: #{_my_deconv2d_impl.1} parent=11 // pred_fallthru
        _
    $region12: #{_my_deconv2d_impl.1} parent=5 // pred_fallthru
      _
    %p173 = scmp.lt.s32.totalorder %s10, 2
    // Predicated region
    $region25: #{_my_deconv2d_impl.1} parent=5 // pred_check
      %p174 = pneg %p173
    $region26: #{_my_deconv2d_impl.1} parent=5 // pred_check_branch
      %176 = sbr.rel (%p174) target = $region28
    $region27: #{_my_deconv2d_impl.1} parent=5 // pred_region
      // Predicated region
      $region29: #{_my_deconv2d_impl.1} parent=27 // pred_check
        %p177 = pneg %p42
      $region30: #{_my_deconv2d_impl.1} parent=27 // pred_check_branch
        %179 = sbr.rel (%p177) target = $region32
      $region31: #{_my_deconv2d_impl.1} parent=27 // pred_region
        %p180 = scmp.lt.s32.totalorder %s17, 1
        %s181 = scalar_select %p180, %s17, 1
        %s182 = smul.addr %s181, 2
        %s183 = smul.addr %s182, 4
        %s184 = scalar_lea.vmem %s0, %s183
      $region32: #{_my_deconv2d_impl.1} parent=27 // pred_fallthru
        _
    $region28: #{_my_deconv2d_impl.1} parent=5 // pred_fallthru
      _
    %p185 = scmp.le.s32.totalorder 1, %s10
    %p186 = scmp.lt.s32.totalorder %s10, 3
    %p187 = pnand %p185, %p186
    %p188 = pneg %p187
    // Predicated region
    $region33: #{_my_deconv2d_impl.1} parent=5 // pred_check
      _
    $region34: #{_my_deconv2d_impl.1} parent=5 // pred_check_branch
      %190 = sbr.rel (%p187) target = $region36
    $region35: #{_my_deconv2d_impl.1} parent=5 // pred_region
      %s191 = ssub.s32 %s10, 1
      %p192 = scmp.lt.s32.totalorder %s19, 1
      %s193 = scalar_select %p192, %s19, 1
      %s194 = smul.addr %s193, 2
      %s195 = smul.addr %s194, 4
      %s196 = scalar_lea.vmem %s0, %s195
      %p197 = pneg %p48
      %p198 = pneg %p45
      %p199 = scmp.lt.s32.totalorder %s20, 0
      %s200 = scalar_select %p199, %s20, 0
      %s201 = smul.addr %s200, 12
      %s202 = smul.addr %s201, 4
      %s203 = scalar_lea.vmem %s1, %s202
      %p204 = pneg %p74
      %p205 = pneg %p71
      %p206 = pneg %p95
      %p207 = pneg %p92
      %p208 = pneg %p116
      %p209 = pneg %p113
      %p210 = pneg %p144
      %p211 = pneg %p141
      %s212 = smul.u32 4, %s20
      %p213 = scmp.lt.s32.totalorder %s19, 1
      %s214 = scalar_select %p213, %s19, 1
      %p215 = scmp.lt.s32.totalorder %s212, 3
      %s216 = scalar_select %p215, %s212, 3
      %s217 = smul.addr %s216, 2
      %s218 = smul.addr %s214, 8
      %s219 = sadd.s32 %s217, %s218
      %s220 = smul.addr %s219, 8
      %s221 = scalar_lea.vmem %s4, %s220
      %p222 = scmp.lt.s32.totalorder %s19, 1
      %s223 = scalar_select %p222, %s19, 1
      %s224 = smul.addr %s223, 2
      %s225 = smul.addr %s224, 4
      %s226 = scalar_lea.vmem %s0, %s225
      %p227 = scmp.lt.s32.totalorder %s20, 0
      %s228 = scalar_select %p227, %s20, 0
      %s229 = smul.addr %s228, 12
      %s230 = smul.addr %s229, 4
      %s231 = scalar_lea.vmem %s1, %s230
      %s232 = smul.u32 4, %s20
      %p233 = scmp.lt.s32.totalorder %s19, 1
      %s234 = scalar_select %p233, %s19, 1
      %p235 = scmp.lt.s32.totalorder %s232, 3
      %s236 = scalar_select %p235, %s232, 3
      %s237 = smul.addr %s236, 2
      %s238 = smul.addr %s234, 8
      %s239 = sadd.s32 %s237, %s238
      %s240 = smul.addr %s239, 8
      %s241 = scalar_lea.vmem %s4, %s240
      %s242 = smul.u32 4, %s20
      %v244 = vld [vmem:[%s226] sm:$0xf]
      %v245 = vld [vmem:[%s226 + $0x4] sm:$0xf]
      %v246 = vld [vmem:[%s231] sm:$0xf]
      %v247 = vld [vmem:[%s231 + $0x4] sm:$0xf]
      %v248 = vld [vmem:[%s231 + $0x8] sm:$0xf]
      %v249 = vld [vmem:[%s231 + $0xc] sm:$0xf]
      %v250 = vld [vmem:[%s231 + $0x10] sm:$0xf]
      %v251 = vld [vmem:[%s231 + $0x14] sm:$0xf]
      %v252 = vld [vmem:[%s231 + $0x18] sm:$0xf]
      %v253 = vld [vmem:[%s231 + $0x1c] sm:$0xf]
      %v254 = vld [vmem:[%s231 + $0x20] sm:$0xf]
      %v255 = vld [vmem:[%s231 + $0x24] sm:$0xf]
      %v256 = vld [vmem:[%s231 + $0x28] sm:$0xf]
      %v257 = vld [vmem:[%s231 + $0x2c] sm:$0xf]
      %v270 = vunpack.c.l.b16 %v246
      %v271 = vunpack.c.l.b16 %v247
      %v272 = vunpack.c.l.b16 %v248
      %v273 = vunpack.c.l.b16 %v249
      %v274 = vunpack.c.l.b16 %v250
      %v275 = vunpack.c.l.b16 %v251
      %v276 = vunpack.c.l.b16 %v252
      %v277 = vunpack.c.l.b16 %v253
      %v278 = vunpack.c.l.b16 %v254
      %v279 = vunpack.c.l.b16 %v255
      %v280 = vunpack.c.l.b16 %v256
      %v281 = vunpack.c.l.b16 %v257
      %v282 = vpack.c.b16 %v271, %v270
      %v283 = vpack.c.b16 %v273, %v272
      %v284 = vpack.c.b16 %v275, %v274
      %v285 = vpack.c.b16 %v277, %v276
      %v286 = vpack.c.b16 %v279, %v278
      %v287 = vpack.c.b16 %v281, %v280
      %v290 = vunpack.c.l.b16 %v244
      %v291 = vunpack.c.l.b16 %v245
      %v292 = vpack.c.b16 %v291, %v290
      %vm294 = vcmask 130048
      %v296 = vsel %vm294, %v282, 0
      %v299 = vsel %vm294, %v283, 0
      %v302 = vsel %vm294, %v284, 0
      %v305 = vsel %vm294, %v285, 0
      %v308 = vsel %vm294, %v286, 0
      %v311 = vsel %vm294, %v287, 0
      %313 = vmatprep.subr.bf16.mxu0 0
      %314 = vmatpush1.bf16.msra.mxu0 0
      %315 = vmatprep.subr.bf16.mxu0 0
      %316 = vmatpush1.bf16.msra.mxu0 0
      %317 = vmatprep.subr.bf16.mxu0 0
      %318 = vmatpush1.bf16.msra.mxu0 0
      %319 = vmatprep.subr.bf16.mxu0 0
      %320 = vmatpush1.bf16.msra.mxu0 0
      %321 = vmatprep.subr.bf16.mxu0 0
      %322 = vmatpush1.bf16.msra.mxu0 0
      %323 = vmatprep.subr.bf16.mxu0 0
      %324 = vmatpush1.bf16.msra.mxu0 0
      %325 = vmatprep.subr.bf16.mxu0 0
      %326 = vmatpush1.bf16.msra.mxu0 0
      %327 = vmatprep.subr.bf16.mxu0 0
      %328 = vmatpush1.bf16.msra.mxu0 %v292
      %329 = vmatprep.subr.bf16.mxu0 0
      %330 = vmatpush2.bf16.msra.mxu0 0
      %331 = vmatprep.subr.bf16.mxu0 0
      %332 = vmatpush2.bf16.msra.mxu0 0
      %333 = vmatprep.subr.bf16.mxu0 0
      %334 = vmatpush2.bf16.msra.mxu0 0
      %335 = vmatprep.subr.bf16.mxu0 0
      %336 = vmatpush2.bf16.msra.mxu0 0
      %337 = vmatprep.subr.bf16.mxu0 0
      %338 = vmatpush2.bf16.msra.mxu0 0
      %339 = vmatprep.subr.bf16.mxu0 0
      %340 = vmatpush2.bf16.msra.mxu0 0
      %341 = vmatprep.subr.bf16.mxu0 0
      %342 = vmatpush2.bf16.msra.mxu0 0
      %343 = vmatprep.subr.bf16.mxu0 0
      %344 = vmatpush2.bf16.msra.mxu0 0
      %345 = vmatprep.mubr.bf16.mxu0 0
      %346 = vmatmul.mubr.bf16.gmra.mxu0 %v296
      %v347 = vpop.f32.mrf.mxu0
      %v348 = vadd.f32 0.0, %v347
      %v349 = vpop.f32.mrf.mxu0
      %v350 = vpop.f32.mrf.mxu0
      %v351 = vadd.f32 0.0, %v350
      %v352 = vpop.f32.mrf.mxu0
      %353 = vmatprep.mubr.bf16.mxu0 0
      %354 = vmatmul.mubr.bf16.gmra.mxu0 %v299
      %v355 = vpop.f32.mrf.mxu0
      %v356 = vadd.f32 0.0, %v355
      %v357 = vpop.f32.mrf.mxu0
      %v358 = vpop.f32.mrf.mxu0
      %v359 = vadd.f32 0.0, %v358
      %v360 = vpop.f32.mrf.mxu0
      %361 = vmatprep.mubr.bf16.mxu0 0
      %362 = vmatmul.mubr.bf16.gmra.mxu0 %v302
      %v363 = vpop.f32.mrf.mxu0
      %v364 = vadd.f32 0.0, %v363
      %v365 = vpop.f32.mrf.mxu0
      %v366 = vpop.f32.mrf.mxu0
      %v367 = vadd.f32 0.0, %v366
      %v368 = vpop.f32.mrf.mxu0
      %369 = vmatprep.mubr.bf16.mxu0 0
      %370 = vmatmul.mubr.bf16.gmra.mxu0 %v305
      %v371 = vpop.f32.mrf.mxu0
      %v372 = vadd.f32 0.0, %v371
      %v373 = vpop.f32.mrf.mxu0
      %v374 = vpop.f32.mrf.mxu0
      %v375 = vadd.f32 0.0, %v374
      %v376 = vpop.f32.mrf.mxu0
      %377 = vmatprep.mubr.bf16.mxu0 0
      %378 = vmatmul.mubr.bf16.gmra.mxu0 %v308
      %v379 = vpop.f32.mrf.mxu0
      %v380 = vadd.f32 0.0, %v379
      %v381 = vpop.f32.mrf.mxu0
      %v382 = vpop.f32.mrf.mxu0
      %v383 = vadd.f32 0.0, %v382
      %v384 = vpop.f32.mrf.mxu0
      %385 = vmatprep.mubr.bf16.mxu0 0
      %386 = vmatmul.mubr.bf16.gmra.mxu0 %v311
      %v387 = vpop.f32.mrf.mxu0
      %v388 = vadd.f32 0.0, %v387
      %v389 = vpop.f32.mrf.mxu0
      %v390 = vpop.f32.mrf.mxu0
      %v391 = vadd.f32 0.0, %v390
      %v392 = vpop.f32.mrf.mxu0
      %393 = vdwg.mxu0
      %v394 = vpack.c.bf16 %v351, %v348
      %v395 = vpack.c.bf16 %v359, %v356
      %v396 = vpack.c.bf16 %v367, %v364
      %v397 = vpack.c.bf16 %v375, %v372
      %v398 = vpack.c.bf16 %v383, %v380
      %v399 = vpack.c.bf16 %v391, %v388
      %v400 = vld [vmem:[%s2] sm:$0xff]
      %v401 = vld [vmem:[%s2 + $0x8] sm:$0xff]
      %v402 = vld [vmem:[%s2 + $0x10] sm:$0xff]
      %v403 = vld [vmem:[%s2 + $0x18] sm:$0xff]
      %v404 = vld [vmem:[%s2 + $0x20] sm:$0xff]
      %v405 = vld [vmem:[%s2 + $0x28] sm:$0xff]
      %v406 = vld [vmem:[%s2 + $0x30] sm:$0xff]
      %v407 = vld [vmem:[%s2 + $0x38] sm:$0xff]
      %s408 = scalar_lea.vmem %s2, 64
      %v409 = vld [vmem:[%s408] sm:$0xff]
      %v410 = vld [vmem:[%s408 + $0x8] sm:$0xff]
      %v411 = vld [vmem:[%s408 + $0x10] sm:$0xff]
      %v412 = vld [vmem:[%s408 + $0x18] sm:$0xff]
      %v413 = vld [vmem:[%s408 + $0x20] sm:$0xff]
      %v414 = vld [vmem:[%s408 + $0x28] sm:$0xff]
      %v415 = vld [vmem:[%s408 + $0x30] sm:$0xff]
      %v416 = vld [vmem:[%s408 + $0x38] sm:$0xff]
      %v425 = vunpack.c.l.b16 %v409
      %v426 = vunpack.c.h.b16 %v409
      %v427 = vunpack.c.l.b16 %v410
      %v428 = vunpack.c.h.b16 %v410
      %v429 = vunpack.c.l.b16 %v411
      %v430 = vunpack.c.h.b16 %v411
      %v431 = vunpack.c.l.b16 %v412
      %v432 = vunpack.c.h.b16 %v412
      %v433 = vunpack.c.l.b16 %v413
      %v434 = vunpack.c.h.b16 %v413
      %v435 = vunpack.c.l.b16 %v414
      %v436 = vunpack.c.h.b16 %v414
      %v437 = vunpack.c.l.b16 %v415
      %v438 = vunpack.c.h.b16 %v415
      %v439 = vunpack.c.l.b16 %v416
      %v440 = vunpack.c.h.b16 %v416
      %v441 = vpack.c.b16 %v427, %v425
      %v442 = vpack.c.b16 %v428, %v426
      %v443 = vpack.c.b16 %v431, %v429
      %v444 = vpack.c.b16 %v432, %v430
      %v445 = vpack.c.b16 %v435, %v433
      %v446 = vpack.c.b16 %v436, %v434
      %v447 = vpack.c.b16 %v439, %v437
      %v448 = vpack.c.b16 %v440, %v438
      %vm457 = vcmask 523264
      %v459 = vsel %vm457, %v396, 0
      %v462 = vsel %vm457, %v397, 0
      %464 = vmatprep.subr.bf16.mxu0 0
      %465 = vmatpush1.bf16.msra.mxu0 0
      %466 = vmatprep.subr.bf16.mxu0 0
      %467 = vmatpush1.bf16.msra.mxu0 0
      %468 = vmatprep.subr.bf16.mxu0 0
      %469 = vmatpush1.bf16.msra.mxu0 0
      %470 = vmatprep.subr.bf16.mxu0 0
      %471 = vmatpush1.bf16.msra.mxu0 0
      %472 = vmatprep.subr.bf16.mxu0 %v448
      %473 = vmatpush1.bf16.msra.mxu0 %v447
      %474 = vmatprep.subr.bf16.mxu0 %v446
      %475 = vmatpush1.bf16.msra.mxu0 %v445
      %476 = vmatprep.subr.bf16.mxu0 %v444
      %477 = vmatpush1.bf16.msra.mxu0 %v443
      %478 = vmatprep.subr.bf16.mxu0 %v442
      %479 = vmatpush1.bf16.msra.mxu0 %v441
      %480 = vmatprep.subr.bf16.mxu0 0
      %481 = vmatpush2.bf16.msra.mxu0 0
      %482 = vmatprep.subr.bf16.mxu0 0
      %483 = vmatpush2.bf16.msra.mxu0 0
      %484 = vmatprep.subr.bf16.mxu0 0
      %485 = vmatpush2.bf16.msra.mxu0 0
      %486 = vmatprep.subr.bf16.mxu0 0
      %487 = vmatpush2.bf16.msra.mxu0 0
      %488 = vmatprep.subr.bf16.mxu0 0
      %489 = vmatpush2.bf16.msra.mxu0 0
      %490 = vmatprep.subr.bf16.mxu0 0
      %491 = vmatpush2.bf16.msra.mxu0 0
      %492 = vmatprep.subr.bf16.mxu0 0
      %493 = vmatpush2.bf16.msra.mxu0 0
      %494 = vmatprep.subr.bf16.mxu0 0
      %495 = vmatpush2.bf16.msra.mxu0 0
      %496 = vmatprep.mubr.bf16.mxu0 0
      %497 = vmatmul.mubr.bf16.gmra.mxu0 %v459
      %v498 = vpop.f32.mrf.mxu0
      %v499 = vadd.f32 0.0, %v498
      %v500 = vpop.f32.mrf.mxu0
      %v501 = vadd.f32 0.0, %v500
      %v502 = vpop.f32.mrf.mxu0
      %v503 = vadd.f32 0.0, %v502
      %v504 = vpop.f32.mrf.mxu0
      %v505 = vadd.f32 0.0, %v504
      %506 = vmatprep.mubr.bf16.mxu0 0
      %507 = vmatmul.mubr.bf16.gmra.mxu0 %v462
      %v508 = vpop.f32.mrf.mxu0
      %v509 = vadd.f32 0.0, %v508
      %v510 = vpop.f32.mrf.mxu0
      %v511 = vadd.f32 0.0, %v510
      %v512 = vpop.f32.mrf.mxu0
      %v513 = vadd.f32 0.0, %v512
      %v514 = vpop.f32.mrf.mxu0
      %v515 = vadd.f32 0.0, %v514
      %516 = vdwg.mxu0
      %v525 = vunpack.c.l.b16 %v400
      %v526 = vunpack.c.h.b16 %v400
      %v527 = vunpack.c.l.b16 %v401
      %v528 = vunpack.c.h.b16 %v401
      %v529 = vunpack.c.l.b16 %v402
      %v530 = vunpack.c.h.b16 %v402
      %v531 = vunpack.c.l.b16 %v403
      %v532 = vunpack.c.h.b16 %v403
      %v533 = vunpack.c.l.b16 %v404
      %v534 = vunpack.c.h.b16 %v404
      %v535 = vunpack.c.l.b16 %v405
      %v536 = vunpack.c.h.b16 %v405
      %v537 = vunpack.c.l.b16 %v406
      %v538 = vunpack.c.h.b16 %v406
      %v539 = vunpack.c.l.b16 %v407
      %v540 = vunpack.c.h.b16 %v407
      %v541 = vpack.c.b16 %v527, %v525
      %v542 = vpack.c.b16 %v528, %v526
      %v543 = vpack.c.b16 %v531, %v529
      %v544 = vpack.c.b16 %v532, %v530
      %v545 = vpack.c.b16 %v535, %v533
      %v546 = vpack.c.b16 %v536, %v534
      %v547 = vpack.c.b16 %v539, %v537
      %v548 = vpack.c.b16 %v540, %v538
      %v558 = vsel %vm457, %v394, 0
      %v561 = vsel %vm457, %v395, 0
      %563 = vmatprep.subr.bf16.mxu0 0
      %564 = vmatpush1.bf16.msra.mxu0 0
      %565 = vmatprep.subr.bf16.mxu0 0
      %566 = vmatpush1.bf16.msra.mxu0 0
      %567 = vmatprep.subr.bf16.mxu0 0
      %568 = vmatpush1.bf16.msra.mxu0 0
      %569 = vmatprep.subr.bf16.mxu0 0
      %570 = vmatpush1.bf16.msra.mxu0 0
      %571 = vmatprep.subr.bf16.mxu0 %v548
      %572 = vmatpush1.bf16.msra.mxu0 %v547
      %573 = vmatprep.subr.bf16.mxu0 %v546
      %574 = vmatpush1.bf16.msra.mxu0 %v545
      %575 = vmatprep.subr.bf16.mxu0 %v544
      %576 = vmatpush1.bf16.msra.mxu0 %v543
      %577 = vmatprep.subr.bf16.mxu0 %v542
      %578 = vmatpush1.bf16.msra.mxu0 %v541
      %579 = vmatprep.subr.bf16.mxu0 0
      %580 = vmatpush2.bf16.msra.mxu0 0
      %581 = vmatprep.subr.bf16.mxu0 0
      %582 = vmatpush2.bf16.msra.mxu0 0
      %583 = vmatprep.subr.bf16.mxu0 0
      %584 = vmatpush2.bf16.msra.mxu0 0
      %585 = vmatprep.subr.bf16.mxu0 0
      %586 = vmatpush2.bf16.msra.mxu0 0
      %587 = vmatprep.subr.bf16.mxu0 0
      %588 = vmatpush2.bf16.msra.mxu0 0
      %589 = vmatprep.subr.bf16.mxu0 0
      %590 = vmatpush2.bf16.msra.mxu0 0
      %591 = vmatprep.subr.bf16.mxu0 0
      %592 = vmatpush2.bf16.msra.mxu0 0
      %593 = vmatprep.subr.bf16.mxu0 0
      %594 = vmatpush2.bf16.msra.mxu0 0
      %595 = vmatprep.mubr.bf16.mxu0 0
      %596 = vmatmul.mubr.bf16.gmra.mxu0 %v558
      %v597 = vpop.f32.mrf.mxu0
      %v598 = vadd.f32 %v499, %v597
      %v599 = vpop.f32.mrf.mxu0
      %v600 = vadd.f32 %v501, %v599
      %v601 = vpop.f32.mrf.mxu0
      %v602 = vadd.f32 %v503, %v601
      %v603 = vpop.f32.mrf.mxu0
      %v604 = vadd.f32 %v505, %v603
      %605 = vmatprep.mubr.bf16.mxu0 0
      %606 = vmatmul.mubr.bf16.gmra.mxu0 %v561
      %v607 = vpop.f32.mrf.mxu0
      %v608 = vadd.f32 %v509, %v607
      %v609 = vpop.f32.mrf.mxu0
      %v610 = vadd.f32 %v511, %v609
      %v611 = vpop.f32.mrf.mxu0
      %v612 = vadd.f32 %v513, %v611
      %v613 = vpop.f32.mrf.mxu0
      %v614 = vadd.f32 %v515, %v613
      %615 = vdwg.mxu0
      %s616 = scalar_lea.vmem %s2, 128
      %v617 = vld [vmem:[%s616] sm:$0xff]
      %v618 = vld [vmem:[%s616 + $0x8] sm:$0xff]
      %v619 = vld [vmem:[%s616 + $0x10] sm:$0xff]
      %v620 = vld [vmem:[%s616 + $0x18] sm:$0xff]
      %v621 = vld [vmem:[%s616 + $0x20] sm:$0xff]
      %v622 = vld [vmem:[%s616 + $0x28] sm:$0xff]
      %v623 = vld [vmem:[%s616 + $0x30] sm:$0xff]
      %v624 = vld [vmem:[%s616 + $0x38] sm:$0xff]
      %v633 = vunpack.c.l.b16 %v617
      %v634 = vunpack.c.h.b16 %v617
      %v635 = vunpack.c.l.b16 %v618
      %v636 = vunpack.c.h.b16 %v618
      %v637 = vunpack.c.l.b16 %v619
      %v638 = vunpack.c.h.b16 %v619
      %v639 = vunpack.c.l.b16 %v620
      %v640 = vunpack.c.h.b16 %v620
      %v641 = vunpack.c.l.b16 %v621
      %v642 = vunpack.c.h.b16 %v621
      %v643 = vunpack.c.l.b16 %v622
      %v644 = vunpack.c.h.b16 %v622
      %v645 = vunpack.c.l.b16 %v623
      %v646 = vunpack.c.h.b16 %v623
      %v647 = vunpack.c.l.b16 %v624
      %v648 = vunpack.c.h.b16 %v624
      %v649 = vpack.c.b16 %v635, %v633
      %v650 = vpack.c.b16 %v636, %v634
      %v651 = vpack.c.b16 %v639, %v637
      %v652 = vpack.c.b16 %v640, %v638
      %v653 = vpack.c.b16 %v643, %v641
      %v654 = vpack.c.b16 %v644, %v642
      %v655 = vpack.c.b16 %v647, %v645
      %v656 = vpack.c.b16 %v648, %v646
      %v666 = vsel %vm457, %v398, 0
      %v669 = vsel %vm457, %v399, 0
      %671 = vmatprep.subr.bf16.mxu0 0
      %672 = vmatpush1.bf16.msra.mxu0 0
      %673 = vmatprep.subr.bf16.mxu0 0
      %674 = vmatpush1.bf16.msra.mxu0 0
      %675 = vmatprep.subr.bf16.mxu0 0
      %676 = vmatpush1.bf16.msra.mxu0 0
      %677 = vmatprep.subr.bf16.mxu0 0
      %678 = vmatpush1.bf16.msra.mxu0 0
      %679 = vmatprep.subr.bf16.mxu0 %v656
      %680 = vmatpush1.bf16.msra.mxu0 %v655
      %681 = vmatprep.subr.bf16.mxu0 %v654
      %682 = vmatpush1.bf16.msra.mxu0 %v653
      %683 = vmatprep.subr.bf16.mxu0 %v652
      %684 = vmatpush1.bf16.msra.mxu0 %v651
      %685 = vmatprep.subr.bf16.mxu0 %v650
      %686 = vmatpush1.bf16.msra.mxu0 %v649
      %687 = vmatprep.subr.bf16.mxu0 0
      %688 = vmatpush2.bf16.msra.mxu0 0
      %689 = vmatprep.subr.bf16.mxu0 0
      %690 = vmatpush2.bf16.msra.mxu0 0
      %691 = vmatprep.subr.bf16.mxu0 0
      %692 = vmatpush2.bf16.msra.mxu0 0
      %693 = vmatprep.subr.bf16.mxu0 0
      %694 = vmatpush2.bf16.msra.mxu0 0
      %695 = vmatprep.subr.bf16.mxu0 0
      %696 = vmatpush2.bf16.msra.mxu0 0
      %697 = vmatprep.subr.bf16.mxu0 0
      %698 = vmatpush2.bf16.msra.mxu0 0
      %699 = vmatprep.subr.bf16.mxu0 0
      %700 = vmatpush2.bf16.msra.mxu0 0
      %701 = vmatprep.subr.bf16.mxu0 0
      %702 = vmatpush2.bf16.msra.mxu0 0
      %703 = vmatprep.mubr.bf16.mxu0 0
      %704 = vmatmul.mubr.bf16.gmra.mxu0 %v666
      %v705 = vpop.f32.mrf.mxu0
      %v706 = vadd.f32 0.0, %v705
      %v707 = vpop.f32.mrf.mxu0
      %v708 = vadd.f32 0.0, %v707
      %v709 = vpop.f32.mrf.mxu0
      %v710 = vadd.f32 0.0, %v709
      %v711 = vpop.f32.mrf.mxu0
      %v712 = vadd.f32 0.0, %v711
      %713 = vmatprep.mubr.bf16.mxu0 0
      %714 = vmatmul.mubr.bf16.gmra.mxu0 %v669
      %v715 = vpop.f32.mrf.mxu0
      %v716 = vadd.f32 0.0, %v715
      %v717 = vpop.f32.mrf.mxu0
      %v718 = vadd.f32 0.0, %v717
      %v719 = vpop.f32.mrf.mxu0
      %v720 = vadd.f32 0.0, %v719
      %v721 = vpop.f32.mrf.mxu0
      %v722 = vadd.f32 0.0, %v721
      %723 = vdwg.mxu0
      %v724 = vadd.f32 %v598, %v706
      %v725 = vadd.f32 %v600, %v708
      %v726 = vadd.f32 %v602, %v710
      %v727 = vadd.f32 %v604, %v712
      %v728 = vadd.f32 %v608, %v716
      %v729 = vadd.f32 %v610, %v718
      %v730 = vadd.f32 %v612, %v720
      %v731 = vadd.f32 %v614, %v722
      %v732 = vld [vmem:[%s3] sm:$0x3]
      %v734 = vlaneseq
      %v735 = vshrl.u32 %v734, 7
      %v736 = vsub.s32 0, %v735
      %v737 = vrot.slane %v732, %v736
      %v738 = vlaneseq
      %v739 = vshrl.u32 %v738, 7
      %v740 = vsub.s32 1, %v739
      %v741 = vrot.slane %v732, %v740
      %v744 = vadd.f32 %v724, %v737
      %v745 = vadd.f32 %v725, %v741
      %v746 = vadd.f32 %v726, %v737
      %v747 = vadd.f32 %v727, %v741
      %v748 = vadd.f32 %v728, %v737
      %v749 = vadd.f32 %v729, %v741
      %v750 = vadd.f32 %v730, %v737
      %v751 = vadd.f32 %v731, %v741
      %752 = vst [vmem:[%s241] sm:$0xff] %v744
      %753 = vst [vmem:[%s241 + $0x8] sm:$0xff] %v745
      %754 = vst [vmem:[%s241 + $0x10] sm:$0xff] %v746
      %755 = vst [vmem:[%s241 + $0x18] sm:$0xff] %v747
      %756 = vst [vmem:[%s241 + $0x20] sm:$0xff] %v748
      %757 = vst [vmem:[%s241 + $0x28] sm:$0xff] %v749
      %758 = vst [vmem:[%s241 + $0x30] sm:$0xff] %v750
      %759 = vst [vmem:[%s241 + $0x38] sm:$0xff] %v751
      %s760 = smul.u32 4, %s20
      %p761 = scmp.lt.s32.totalorder %s19, 1
      %s762 = scalar_select %p761, %s19, 1
      %p763 = scmp.lt.s32.totalorder %s760, 3
      %s764 = scalar_select %p763, %s760, 3
      %s765 = smul.addr %s764, 2
      %s766 = smul.addr %s762, 8
      %s767 = sadd.s32 %s765, %s766
      %s768 = smul.addr %s767, 8
      %s769 = scalar_lea.vmem %s4, %s768
      // Predicated region
      $region37: #{_my_deconv2d_impl.1} parent=35 // pred_check
        %p770 = pneg %p141
      $region38: #{_my_deconv2d_impl.1} parent=35 // pred_check_branch
        %772 = sbr.rel (%p770) target = $region40
      $region39: #{_my_deconv2d_impl.1} parent=35 // pred_region
        %s773 = smul.u32 4, %s20
      $region40: #{_my_deconv2d_impl.1} parent=35 // pred_fallthru
        _
    $region36: #{_my_deconv2d_impl.1} parent=5 // pred_fallthru
      _
    %p774 = scmp.le.s32.totalorder 2, %s10
    // Predicated region
    $region41: #{_my_deconv2d_impl.1} parent=5 // pred_check
      %p775 = pneg %p774
    $region42: #{_my_deconv2d_impl.1} parent=5 // pred_check_branch
      %777 = sbr.rel (%p775) target = $region44
    $region43: #{_my_deconv2d_impl.1} parent=5 // pred_region
      %s778 = ssub.s32 %s10, 2
      // Predicated region
      $region45: #{_my_deconv2d_impl.1} parent=43 // pred_check
        %p779 = pneg %p147
      $region46: #{_my_deconv2d_impl.1} parent=43 // pred_check_branch
        %781 = sbr.rel (%p779) target = $region48
      $region47: #{_my_deconv2d_impl.1} parent=43 // pred_region
        %s782 = smul.u32 4, %s22
        %p783 = scmp.lt.s32.totalorder %s21, 1
        %s784 = scalar_select %p783, %s21, 1
        %p785 = scmp.lt.s32.totalorder %s782, 3
        %s786 = scalar_select %p785, %s782, 3
        %s787 = smul.addr %s786, 2
        %s788 = smul.addr %s784, 8
        %s789 = sadd.s32 %s787, %s788
        %s790 = smul.addr %s789, 8
        %s791 = scalar_lea.vmem %s4, %s790
      $region48: #{_my_deconv2d_impl.1} parent=43 // pred_fallthru
        _
    $region44: #{_my_deconv2d_impl.1} parent=5 // pred_fallthru
      _
  $region6: #{_my_deconv2d_impl.1} parent=0 // loop_footer
    %s14 = sadd.s32 1, %s10
  $region7: #{_my_deconv2d_impl.1} parent=0 // loop_footer_branch
    %9 = sbr.rel target = $region3
  $region8: #{_my_deconv2d_impl.1} parent=0 // loop_exit
    _

</llo_original>
